<compile_context>
chip_gen: v5e
topology: v5e:2x2
jax: 0.10.0
libtpu: 0.0.40
codegen_flags: <defaults>
</compile_context>

<pallas_src>
import functools

import numpy as np
import jax
import jax.numpy as jnp
from jax.experimental import pallas as pl
from jax.experimental.pallas import tpu as pltpu


def _round_up(x, m):
    return ((x + m - 1) // m) * m


def _device_kind():
    try:
        return jax.devices()[0].device_kind.lower()
    except Exception:
        return ""


@functools.lru_cache(maxsize=1)
def _tpu_tuning():
    """Generation-aware knobs: (vmem_budget_bytes, num_tensorcores, is_v5e)."""
    kind = _device_kind()
    try:
        cap = int(pltpu.get_tpu_info().vmem_capacity_bytes)
    except Exception:
        cap = 0
    if cap <= 0:
        cap = (64 << 20) if "v7" in kind else (128 << 20)
    budget = int(min(cap * 3 // 4, 96 << 20))   # ~96 MiB on v5e/v6e, ~48 MiB on v7x
    num_tc = 2 if "v7" in kind else 1           # only v7x has 2 TensorCores per chip
    is_v5e = ("v5e" in kind) or ("v5 lite" in kind) or ("v5lite" in kind)
    return budget, num_tc, is_v5e


def _output_coords(omin, omax, ostep):
    """Mimic torch.arange(omin + ostep/2, omax, ostep) (count computed in float64)."""
    start = omin + ostep / 2.0
    n = int(np.ceil((omax - start) / ostep))
    return start + ostep * np.arange(n, dtype=np.float64)


def _sample_matrix(out_coords, imin, imax, in_size):
    """Bilinear tap matrix for grid_sample(align_corners=False, padding_mode='zeros')."""
    g = (np.asarray(out_coords, np.float64) - imin) / (imax - imin) * 2.0 - 1.0
    i = (g + 1.0) * in_size / 2.0 - 0.5        # grid_sample un-normalization
    i0 = np.floor(i).astype(np.int64)
    i1 = i0 + 1
    w1 = i - i0
    w0 = 1.0 - w1
    cols = np.arange(in_size)[None, :]
    m0 = (cols == i0[:, None]) & (i0[:, None] >= 0) & (i0[:, None] < in_size)
    m1 = (cols == i1[:, None]) & (i1[:, None] >= 0) & (i1[:, None] < in_size)
    return m0 * w0[:, None] + m1 * w1[:, None]     # float64; OOB taps contribute 0


# ----------------------------- Pallas kernels ---------------------------------------


def _bev_kron_kernel(w_ref, x_ref, o_ref):
    # x_ref: (tm, K), w_ref: (K, Mp) — one lane-dense MXU matmul per grid step.
    x = x_ref[...]
    if x.dtype != w_ref.dtype:
        x = x.astype(w_ref.dtype)
    o_ref[...] = jnp.dot(x, w_ref[...],
                         preferred_element_type=jnp.float32).astype(o_ref.dtype)


def _bev_separable_kernel(wy_ref, wxt_ref, x_ref, o_ref, t_ref):
    # x_ref: (Cb, H_in, W_in); wy_ref: (H_out, H_in); wxt_ref: (W_in, W_out)
    # t_ref scratch: (H_in, Cb*W_out) so BOTH contractions are single wide MXU matmuls.
    cb, hi, wi = x_ref.shape
    wo = wxt_ref.shape[1]
    x = x_ref[...]
    if x.dtype != wxt_ref.dtype:
        x = x.astype(wxt_ref.dtype)
    # Width contraction with channels folded into M: (Cb*H_in, W_in) @ (W_in, W_out).
    # TODO(synk): if H_in % 8 != 0 this reshape is a sublane relayout copy; pad H_in in
    # the slab layout if that ever shows up in profiles.
    t2 = jnp.dot(x.reshape(cb * hi, wi), wxt_ref[...],
                 preferred_element_type=jnp.float32)                  # (Cb*H_in, W_out)
    # Re-pack to (H_in, Cb*W_out): static VMEM stores riding the vst slot.
    for c in range(cb):
        t_ref[:, c * wo:(c + 1) * wo] = t2[c * hi:(c + 1) * hi, :].astype(t_ref.dtype)
    # Height contraction as ONE wide matmul (fills the MXU N dim with Cb*W_out lanes
    # instead of Cb tiny per-channel dots).
    out2 = jnp.dot(wy_ref[...], t_ref[...],
                   preferred_element_type=jnp.float32)                # (H_out, Cb*W_out)
    for c in range(cb):
        o_ref[c] = out2[:, c * wo:(c + 1) * wo].astype(o_ref.dtype)


# ------------------------------- module wrapper --------------------------------------


class BEVGridTransform:
    # Above this kron-weight size the single-matmul path stops making sense
    # (weight grows as (H_in*W_in)*(H_out*W_out)); fall back to the separable path.
    _KRON_WEIGHT_LIMIT_BYTES = 4 << 20

    def __init__(self, *, input_scope, output_scope, prescale_factor=1,
                 _force_separable=False):
        self.input_scope = input_scope
        self.output_scope = output_scope
        self.prescale_factor = prescale_factor
        self._force_separable = _force_separable
        self._cache = {}          # (N, C, H_in, W_in, dtype) -> (jitted fn, weights)
        if prescale_factor != 1:
            # TODO(synk): prescale path (F.interpolate bilinear) not implemented; it can
            # be folded in by composing a border-clamped resize matrix with Wy/Wx.
            raise NotImplementedError("prescale_factor != 1 not supported")

    def _tap_matrices(self, H_in, W_in):
        (imin_h, imax_h, _) = self.input_scope[0]
        (imin_w, imax_w, _) = self.input_scope[1]
        # output rows (meshgrid dim 0) carry y -> sample input height; output cols carry
        # x -> sample input width (the module stacks grid = [v, u] for grid_sample).
        Wy = _sample_matrix(_output_coords(*self.output_scope[0]), imin_h, imax_h, H_in)
        Wx = _sample_matrix(_output_coords(*self.output_scope[1]), imin_w, imax_w, W_in)
        return Wy, Wx   # float64 numpy, shapes (H_out, H_in) / (W_out, W_in)

    def __call__(self, x):
        N, C, H_in, W_in = x.shape
        key = (N, C, H_in, W_in, str(x.dtype))
        entry = self._cache.get(key)
        if entry is None:
            entry = self._build(N, C, H_in, W_in, x.dtype)
            self._cache[key] = entry
        fn, weights = entry
        return fn(*weights, x)

    def _build(self, N, C, H_in, W_in, dtype):
        Wy, Wx = self._tap_matrices(H_in, W_in)
        H_out, W_out = Wy.shape[0], Wx.shape[0]
        K, M_out = H_in * W_in, H_out * W_out
        budget, num_tc, is_v5e = _tpu_tuning()
        # bf16 fast path: keep bf16 operands on the MXU (f32 accumulate), f32 otherwise.
        w_dtype = jnp.bfloat16 if np.dtype(dtype) == np.dtype(jnp.bfloat16) else jnp.float32

        use_kron = (not self._force_separable) and \
                   (K * M_out * 4 <= self._KRON_WEIGHT_LIMIT_BYTES)
        # v5e's lower MXU roofline: the kron path costs K x more MACs per output
        # element, so cross over to the separable path earlier there.
        if use_kron and is_v5e and (K * M_out) / (K + M_out) > 256:
            use_kron = False
        args = (N, C, H_in, W_in, H_out, W_out, Wy, Wx, dtype, w_dtype, budget, num_tc)
        return self._build_kron(*args) if use_kron else self._build_separable(*args)

    # --- path 1: single kron(Wy, Wx) matmul, tiled over the N*C axis only ------------
    def _build_kron(self, N, C, H_in, W_in, H_out, W_out, Wy, Wx, dtype, w_dtype,
                    budget, num_tc):
        K, M_out = H_in * W_in, H_out * W_out
        Mp = _round_up(M_out, 128)                # lane-dense output -> unmasked vst
        nc = N * C
        esize = np.dtype(dtype).itemsize
        w_esize = np.dtype(w_dtype).itemsize
        sub = max(8, 32 // esize)                 # sublane multiple (8 f32, 16 bf16)

        # W_kt[iy*W_in+ix, oy*W_out+ox] = Wy[oy,iy] * Wx[ox,ix]; zero-pad lanes to Mp.
        W_np = np.kron(Wy, Wx).T
        if Mp != M_out:
            W_np = np.pad(W_np, ((0, 0), (0, Mp - M_out)))
        W_kt = jnp.asarray(np.ascontiguousarray(W_np), w_dtype)      # (K, Mp)

        # Tile the N*C axis as big as VMEM allows (fewer, larger DMAs; less per-step
        # pipeline overhead).  The grid-invariant weight is still double-buffered by the
        # default pipeline, so budget it twice.
        # TODO(synk): single-buffer the weight via pipeline_mode=pl.Buffered(1) on v7x
        # once verified; it frees ~weight-size of VMEM for larger x tiles.
        weight_bytes = 2 * K * Mp * w_esize
        stream_row = 2 * (K + Mp) * esize
        avail = max(budget - weight_bytes, sub * stream_row)
        tm = max(sub, min(1024, (avail // stream_row) // sub * sub))
        tm = min(tm, _round_up(nc, sub))
        if num_tc >= 2 and nc >= 2 * sub:
            tm = min(tm, _round_up((nc + 1) // 2, sub))   # >=2 grid steps only on 2-TC
        nc_rows = nc if tm <= nc else tm          # tiny pad only when nc < one tile
        grid = (pl.cdiv(nc_rows, tm),)

        cost = pl.CostEstimate(
            flops=int(2 * nc * K * Mp), transcendentals=0,
            bytes_accessed=int(nc * (K + Mp) * esize + K * Mp * w_esize))
        params = pltpu.CompilerParams(dimension_semantics=("parallel",),
                                      vmem_limit_bytes=int(budget))

        def fn(w, x):
            x_flat = x.reshape(nc, K)             # contiguous -> free reshape, no copy
            if nc_rows != nc:                     # only when nc < one sublane tile
                x_flat = jnp.pad(x_flat, ((0, nc_rows - nc), (0, 0)))
            out = pl.pallas_call(
                _bev_kron_kernel,
                out_shape=jax.ShapeDtypeStruct((nc_rows, Mp), dtype),
                grid=grid,
                in_specs=[
                    pl.BlockSpec((K, Mp), lambda i: (0, 0)),   # grid-invariant weight
                    pl.BlockSpec((tm, K), lambda i: (i, 0)),   # tm flattened slabs
                ],
                out_specs=pl.BlockSpec((tm, Mp), lambda i: (i, 0)),
                compiler_params=params,
                cost_estimate=cost,
            )(w, x_flat)
            # Partial last block rows were masked on write; drop lane padding here.
            return out[:nc, :M_out].reshape(N, C, H_out, W_out)

        return jax.jit(fn), (W_kt,)

    # --- path 2: separable Wy @ x @ Wx^T, channel slabs, two wide matmuls ------------
    def _build_separable(self, N, C, H_in, W_in, H_out, W_out, Wy, Wx, dtype, w_dtype,
                         budget, num_tc):
        nc = N * C
        esize = np.dtype(dtype).itemsize
        w_esize = np.dtype(w_dtype).itemsize
        Wy_j = jnp.asarray(Wy, w_dtype)                              # (H_out, H_in)
        WxT_j = jnp.asarray(np.ascontiguousarray(Wx.T), w_dtype)     # (W_in, W_out)

        # Channel-slab size from the generation-aware VMEM budget (in+out double
        # buffered plus the (H_in, cb*W_out) repack scratch); cap trace-time unroll.
        per_slab = 2 * (H_in * W_in + H_out * W_out) * esize
        scratch_c = H_in * W_out * w_esize
        weights_b = 2 * (H_out * H_in + W_in * W_out) * w_esize
        avail = max(budget // 2 - weights_b, per_slab + scratch_c)
        cb = int(max(1, min(64, nc, avail // (per_slab + scratch_c))))
        if num_tc >= 2 and nc >= 2 and pl.cdiv(nc, cb) < 2:
            cb = max(1, (nc + 1) // 2)            # >=2 grid steps only on 2-TC chips
        grid = (pl.cdiv(nc, cb),)

        cost = pl.CostEstimate(
            flops=int(2 * nc * H_in * W_out * (W_in + H_out)), transcendentals=0,
            bytes_accessed=int(nc * (H_in * W_in + H_out * W_out) * esize
                               + (H_out * H_in + W_in * W_out) * w_esize))
        params = pltpu.CompilerParams(dimension_semantics=("parallel",),
                                      vmem_limit_bytes=int(budget))

        def fn(wy, wxt, x):
            xs = x.reshape(nc, H_in, W_in)        # contiguous -> free reshape, no copy
            out = pl.pallas_call(
                _bev_separable_kernel,
                out_shape=jax.ShapeDtypeStruct((nc, H_out, W_out), dtype),
                grid=grid,
                in_specs=[
                    pl.BlockSpec((H_out, H_in), lambda i: (0, 0)),
                    pl.BlockSpec((W_in, W_out), lambda i: (0, 0)),
                    pl.BlockSpec((cb, H_in, W_in), lambda i: (i, 0, 0)),
                ],
                out_specs=pl.BlockSpec((cb, H_out, W_out), lambda i: (i, 0, 0)),
                scratch_shapes=[pltpu.VMEM((H_in, cb * W_out), w_dtype)],
                compiler_params=params,
                cost_estimate=cost,
            )(wy, wxt, xs)
            return out.reshape(N, C, H_out, W_out)

        return jax.jit(fn), (Wy_j, WxT_j)


# -------------------------- dense NumPy reference (spec replica) ---------------------


def _reference_forward(x, input_scope, output_scope):
    """Pure NumPy re-implementation of the PyTorch module (dense bilinear grid_sample,
    align_corners=False, zeros padding), in float64 — independent of the separable
    Wy/Wx formulation so it catches axis-ordering mistakes."""
    x = np.asarray(x, np.float64)
    coords = []
    for (imin, imax, _), (omin, omax, ostep) in zip(input_scope, output_scope):
        v = _output_coords(omin, omax, ostep)
        coords.append((v - imin) / (imax - imin) * 2.0 - 1.0)
    u, v = np.meshgrid(coords[0], coords[1], indexing="ij")
    grid = np.stack([v, u], axis=-1)                     # [..., (x, y)] as in the module
    N, C, H, W = x.shape
    gx, gy = grid[..., 0], grid[..., 1]
    ix = (gx + 1.0) * W / 2.0 - 0.5
    iy = (gy + 1.0) * H / 2.0 - 0.5
    ix0 = np.floor(ix).astype(np.int64)
    iy0 = np.floor(iy).astype(np.int64)
    ix1, iy1 = ix0 + 1, iy0 + 1
    wx1, wy1 = ix - ix0, iy - iy0
    wx0, wy0 = 1.0 - wx1, 1.0 - wy1
    out = np.zeros((N, C) + gx.shape, dtype=np.float64)
    for iyk, ixk, w in ((iy0, ix0, wy0 * wx0), (iy0, ix1, wy0 * wx1),
                        (iy1, ix0, wy1 * wx0), (iy1, ix1, wy1 * wx1)):
        valid = (iyk >= 0) & (iyk < H) & (ixk >= 0) & (ixk < W)
        vals = x[:, :, np.clip(iyk, 0, H - 1), np.clip(ixk, 0, W - 1)]
        out += vals * (w * valid)[None, None]
    return out


if __name__ == "__main__":
    key = jax.random.PRNGKey(0)

    # --- test 1: square example through the kron (single-matmul) path ----------------
    N, C, H_in, W_in = 2, 4, 16, 16
    x = jax.random.normal(key, (N, C, H_in, W_in), dtype=jnp.float32)
    scope_sq_in = [(-51.2, 51.2, 6.4), (-51.2, 51.2, 6.4)]
    scope_sq_out = [(-50.0, 50.0, 5.0), (-50.0, 50.0, 5.0)]
    tf1 = BEVGridTransform(input_scope=scope_sq_in, output_scope=scope_sq_out)
    out1 = jax.block_until_ready(tf1(x))
    assert out1.shape == (N, C, 20, 20), out1.shape
    ref1 = _reference_forward(np.asarray(x), scope_sq_in, scope_sq_out)
    assert np.allclose(np.asarray(out1), ref1, rtol=1e-4, atol=1e-4), "kron path (square) mismatch"
    out1b = jax.block_until_ready(tf1(x))        # cached + jitted second call
    assert np.allclose(np.asarray(out1b), ref1, rtol=1e-4, atol=1e-4), "cached call mismatch"

    # --- test 2: non-square H/W with asymmetric scopes (catches H/W axis swaps) ------
    H2, W2 = 16, 24
    x2 = jax.random.normal(jax.random.PRNGKey(0), (N, C, H2, W2), dtype=jnp.float32)
    scope_ns_in = [(-51.2, 51.2, 6.4), (-48.0, 48.0, 4.0)]
    scope_ns_out = [(-50.0, 50.0, 5.0), (-40.0, 40.0, 2.5)]
    tf2 = BEVGridTransform(input_scope=scope_ns_in, output_scope=scope_ns_out)
    out2 = jax.block_until_ready(tf2(x2))
    assert out2.shape == (N, C, 20, 32), out2.shape
    ref2 = _reference_forward(np.asarray(x2), scope_ns_in, scope_ns_out)
    assert np.allclose(np.asarray(out2), ref2, rtol=1e-4, atol=1e-4), "kron path (non-square) mismatch"

    # --- test 3: same problem through the separable (large-grid) fallback path -------
    tf3 = BEVGridTransform(input_scope=scope_ns_in, output_scope=scope_ns_out,
                           _force_separable=True)
    out3 = jax.block_until_ready(tf3(x2))
    assert out3.shape == (N, C, 20, 32), out3.shape
    assert np.allclose(np.asarray(out3), ref2, rtol=1e-4, atol=1e-4), "separable path mismatch"

    # --- test 4: bf16 fast path (bf16 operands on the MXU, f32 accumulate) -----------
    x_bf = x.astype(jnp.bfloat16)
    tf4 = BEVGridTransform(input_scope=scope_sq_in, output_scope=scope_sq_out)
    out4 = jax.block_until_ready(tf4(x_bf))
    assert out4.shape == (N, C, 20, 20), out4.shape
    assert out4.dtype == jnp.bfloat16, out4.dtype
    ref4 = _reference_forward(np.asarray(x_bf.astype(jnp.float32)), scope_sq_in, scope_sq_out)
    assert np.allclose(np.asarray(out4.astype(jnp.float32)), ref4, rtol=5e-2, atol=5e-2), \
        "bf16 fast path mismatch"

    print("KERNEL_OK")
</pallas_src>

<mosaic_0001>
module attributes {stable_mosaic.version = 11 : i64} {
  func.func @_bev_kron_kernel(%arg0: i32, %arg1: memref<256x512xf32, #tpu.memory_space<vmem>>, %arg2: memref<8x256xf32, #tpu.memory_space<vmem>>, %arg3: memref<8x512xf32, #tpu.memory_space<vmem>>) attributes {dimension_semantics = [#tpu.dimension_semantics<parallel>], iteration_bounds = array<i64: 1>, scalar_prefetch = 0 : i64, scratch_operands = 0 : i64, tpu.core_type = #tpu.core_type<tc>, window_params = [{pipeline_mode = #tpu.pipeline_mode<synchronous>, transform_indices = @transform_0, window_bounds = array<i64: 256, 512>}, {transform_indices = @transform_1, window_bounds = array<i64: 8, 256>}, {transform_indices = @transform_2, window_bounds = array<i64: 8, 512>}]} {
    %c0 = arith.constant 0 : index
    %c0_0 = arith.constant 0 : index
    %0 = vector.load %arg2[%c0, %c0_0] : memref<8x256xf32, #tpu.memory_space<vmem>>, vector<8x256xf32>
    %c0_1 = arith.constant 0 : index
    %c0_2 = arith.constant 0 : index
    %1 = vector.load %arg1[%c0_1, %c0_2] : memref<256x512xf32, #tpu.memory_space<vmem>>, vector<256x512xf32>
    %cst = arith.constant dense<0.000000e+00> : vector<8x512xf32>
    %2 = tpu.matmul %0, %1, %cst {dimension_numbers = #tpu.dot_dimension_numbers<[1], [0], [0], [1], [0, 0, 1, 1], [], []>} : vector<8x256xf32>, vector<256x512xf32>, vector<8x512xf32> -> vector<8x512xf32>
    %c0_3 = arith.constant 0 : index
    %c0_4 = arith.constant 0 : index
    %3 = vector.load %arg3[%c0_3, %c0_4] : memref<8x512xf32, #tpu.memory_space<vmem>>, vector<8x512xf32>
    tpu.vector_store %arg3[%c0_3, %c0_4], %2 {strides = array<i32>} : memref<8x512xf32, #tpu.memory_space<vmem>>, vector<8x512xf32>,
    return
  }
  func.func @transform_0(%arg0: i32) -> (i32, i32) {
    %c0_i32 = arith.constant 0 : i32
    %c0_i32_0 = arith.constant 0 : i32
    %c0_i32_1 = arith.constant 0 : i32
    return %c0_i32, %c0_i32_0 : i32, i32
  }
  func.func @transform_1(%arg0: i32) -> (i32, i32) {
    %c0_i32 = arith.constant 0 : i32
    %c0_i32_0 = arith.constant 0 : i32
    return %arg0, %c0_i32 : i32, i32
  }
  func.func @transform_2(%arg0: i32) -> (i32, i32) {
    %c0_i32 = arith.constant 0 : i32
    %c0_i32_0 = arith.constant 0 : i32
    return %arg0, %c0_i32 : i32, i32
  }
}

</mosaic_0001>

<llo_original>
// kernel: fn.1
$region0: #{fn.1}
  #allocation0 [shape = 'u32[]', space=smem, size = 0x4, offset = 0x4, fixed_abs, tag = 'smem constant byte address 0x4 - core index']
  #allocation1 [shape = 'u32[72,128]{1,0:T(1,128)}', space=vmem, size = 0x9000, scoped, tag = 'internal scratch']
  %s0 = inlined_call_operand.hbm [shape: f32[256,512], index: 0, kind: input, shape index: {}]
  %s1 = inlined_call_operand.vmem [shape: f32[8,256], index: 1, kind: input, shape index: {}]
  %s2 = inlined_call_operand.vmem [shape: f32[8,512], index: 2, kind: output, shape index: {}]
  %s3 = sld [smem:[#allocation0]]
  $region22: #{fn.1} parent=0
    _
  %s5 = ssub.s32 1, %s3
  %s6 = scalar_select 0, %s5, %s3
  $region1: #{fn.1} parent=0
    #allocation2 [shape = 'u8[524288]{0}', space=vmem, size = 0x80000, scoped, tag = 'input window, operand 0, single buffered']
    #allocation3 [shape = 's32[1]{0}', space=sflag, size = 0x4, scoped, tag = 'scoped memory for fn.1']
    %7 = vsyncpa [#allocation3], 0
    // Predicated region
    $region2: #{fn.1} parent=1 // pred_check
      _
    $region3: #{fn.1} parent=1 // pred_check_branch
      %9 = sbr.rel (0) target = $region5
    $region4: #{fn.1} parent=1 // pred_region
      %11 = vsyncadd [#allocation3], 0
      %s12 = sshll.u32 %s0, 4
      %s13 = int_to_ptr.hbm [resolvable:$true] %s12
      %s14 = sshll.u32 [#allocation2], 4
      %s15 = int_to_ptr.vmem [resolvable:$true] %s14
      %20 = dma.hbm_to_vmem [thread:$0]  %s13, 16384, %s15, [#allocation3], 512, 512, 32
    $region5: #{fn.1} parent=1 // pred_fallthru
      _
    // Predicated region
    $region6: #{fn.1} parent=1 // pred_check
      _
    $region7: #{fn.1} parent=1 // pred_check_branch
      %22 = sbr.rel (0) target = $region9
    $region8: #{fn.1} parent=1 // pred_region
      _
    $region9: #{fn.1} parent=1 // pred_fallthru
      _
    // Predicated region
    $region10: #{fn.1} parent=1 // pred_check
      _
    $region11: #{fn.1} parent=1 // pred_check_branch
      %24 = sbr.rel (0) target = $region13
    $region12: #{fn.1} parent=1 // pred_region
      %26 = dma.done [#allocation3], 16384
    $region13: #{fn.1} parent=1 // pred_fallthru
      _
    %v27 = vld [vmem:[%s1] sm:$0xff]
    %v28 = vld [vmem:[%s1 + $0x8] sm:$0xff]
    %v29 = vld [vmem:[#allocation2] sm:$0xff]
    %v30 = vld [vmem:[#allocation2 + $0x8] sm:$0xff]
    %v31 = vld [vmem:[#allocation2 + $0x10] sm:$0xff]
    %v32 = vld [vmem:[#allocation2 + $0x18] sm:$0xff]
    %v33 = vld [vmem:[#allocation2 + $0x20] sm:$0xff]
    %v34 = vld [vmem:[#allocation2 + $0x28] sm:$0xff]
    %v35 = vld [vmem:[#allocation2 + $0x30] sm:$0xff]
    %v36 = vld [vmem:[#allocation2 + $0x38] sm:$0xff]
    %v37 = vld [vmem:[#allocation2 + $0x40] sm:$0xff]
    %v38 = vld [vmem:[#allocation2 + $0x48] sm:$0xff]
    %v39 = vld [vmem:[#allocation2 + $0x50] sm:$0xff]
    %v40 = vld [vmem:[#allocation2 + $0x58] sm:$0xff]
    %v41 = vld [vmem:[#allocation2 + $0x60] sm:$0xff]
    %v42 = vld [vmem:[#allocation2 + $0x68] sm:$0xff]
    %v43 = vld [vmem:[#allocation2 + $0x70] sm:$0xff]
    %v44 = vld [vmem:[#allocation2 + $0x78] sm:$0xff]
    %v45 = vld [vmem:[#allocation2 + $0x80] sm:$0xff]
    %v46 = vld [vmem:[#allocation2 + $0x88] sm:$0xff]
    %v47 = vld [vmem:[#allocation2 + $0x90] sm:$0xff]
    %v48 = vld [vmem:[#allocation2 + $0x98] sm:$0xff]
    %v49 = vld [vmem:[#allocation2 + $0xa0] sm:$0xff]
    %v50 = vld [vmem:[#allocation2 + $0xa8] sm:$0xff]
    %v51 = vld [vmem:[#allocation2 + $0xb0] sm:$0xff]
    %v52 = vld [vmem:[#allocation2 + $0xb8] sm:$0xff]
    %v53 = vld [vmem:[#allocation2 + $0xc0] sm:$0xff]
    %v54 = vld [vmem:[#allocation2 + $0xc8] sm:$0xff]
    %v55 = vld [vmem:[#allocation2 + $0xd0] sm:$0xff]
    %v56 = vld [vmem:[#allocation2 + $0xd8] sm:$0xff]
    %v57 = vld [vmem:[#allocation2 + $0xe0] sm:$0xff]
    %v58 = vld [vmem:[#allocation2 + $0xe8] sm:$0xff]
    %v59 = vld [vmem:[#allocation2 + $0xf0] sm:$0xff]
    %v60 = vld [vmem:[#allocation2 + $0xf8] sm:$0xff]
    %v61 = vld [vmem:[#allocation2 + $0x100] sm:$0xff]
    %v62 = vld [vmem:[#allocation2 + $0x108] sm:$0xff]
    %v63 = vld [vmem:[#allocation2 + $0x110] sm:$0xff]
    %v64 = vld [vmem:[#allocation2 + $0x118] sm:$0xff]
    %v65 = vld [vmem:[#allocation2 + $0x120] sm:$0xff]
    %v66 = vld [vmem:[#allocation2 + $0x128] sm:$0xff]
    %v67 = vld [vmem:[#allocation2 + $0x130] sm:$0xff]
    %v68 = vld [vmem:[#allocation2 + $0x138] sm:$0xff]
    %v69 = vld [vmem:[#allocation2 + $0x140] sm:$0xff]
    %v70 = vld [vmem:[#allocation2 + $0x148] sm:$0xff]
    %v71 = vld [vmem:[#allocation2 + $0x150] sm:$0xff]
    %v72 = vld [vmem:[#allocation2 + $0x158] sm:$0xff]
    %v73 = vld [vmem:[#allocation2 + $0x160] sm:$0xff]
    %v74 = vld [vmem:[#allocation2 + $0x168] sm:$0xff]
    %v75 = vld [vmem:[#allocation2 + $0x170] sm:$0xff]
    %v76 = vld [vmem:[#allocation2 + $0x178] sm:$0xff]
    %v77 = vld [vmem:[#allocation2 + $0x180] sm:$0xff]
    %v78 = vld [vmem:[#allocation2 + $0x188] sm:$0xff]
    %v79 = vld [vmem:[#allocation2 + $0x190] sm:$0xff]
    %v80 = vld [vmem:[#allocation2 + $0x198] sm:$0xff]
    %v81 = vld [vmem:[#allocation2 + $0x1a0] sm:$0xff]
    %v82 = vld [vmem:[#allocation2 + $0x1a8] sm:$0xff]
    %v83 = vld [vmem:[#allocation2 + $0x1b0] sm:$0xff]
    %v84 = vld [vmem:[#allocation2 + $0x1b8] sm:$0xff]
    %v85 = vld [vmem:[#allocation2 + $0x1c0] sm:$0xff]
    %v86 = vld [vmem:[#allocation2 + $0x1c8] sm:$0xff]
    %v87 = vld [vmem:[#allocation2 + $0x1d0] sm:$0xff]
    %v88 = vld [vmem:[#allocation2 + $0x1d8] sm:$0xff]
    %v89 = vld [vmem:[#allocation2 + $0x1e0] sm:$0xff]
    %v90 = vld [vmem:[#allocation2 + $0x1e8] sm:$0xff]
    %v91 = vld [vmem:[#allocation2 + $0x1f0] sm:$0xff]
    %v92 = vld [vmem:[#allocation2 + $0x1f8] sm:$0xff]
    %v93 = vld [vmem:[#allocation2 + $0x200] sm:$0xff]
    %v94 = vld [vmem:[#allocation2 + $0x208] sm:$0xff]
    %v95 = vld [vmem:[#allocation2 + $0x210] sm:$0xff]
    %v96 = vld [vmem:[#allocation2 + $0x218] sm:$0xff]
    %v97 = vld [vmem:[#allocation2 + $0x220] sm:$0xff]
    %v98 = vld [vmem:[#allocation2 + $0x228] sm:$0xff]
    %v99 = vld [vmem:[#allocation2 + $0x230] sm:$0xff]
    %v100 = vld [vmem:[#allocation2 + $0x238] sm:$0xff]
    %v101 = vld [vmem:[#allocation2 + $0x240] sm:$0xff]
    %v102 = vld [vmem:[#allocation2 + $0x248] sm:$0xff]
    %v103 = vld [vmem:[#allocation2 + $0x250] sm:$0xff]
    %v104 = vld [vmem:[#allocation2 + $0x258] sm:$0xff]
    %v105 = vld [vmem:[#allocation2 + $0x260] sm:$0xff]
    %v106 = vld [vmem:[#allocation2 + $0x268] sm:$0xff]
    %v107 = vld [vmem:[#allocation2 + $0x270] sm:$0xff]
    %v108 = vld [vmem:[#allocation2 + $0x278] sm:$0xff]
    %v109 = vld [vmem:[#allocation2 + $0x280] sm:$0xff]
    %v110 = vld [vmem:[#allocation2 + $0x288] sm:$0xff]
    %v111 = vld [vmem:[#allocation2 + $0x290] sm:$0xff]
    %v112 = vld [vmem:[#allocation2 + $0x298] sm:$0xff]
    %v113 = vld [vmem:[#allocation2 + $0x2a0] sm:$0xff]
    %v114 = vld [vmem:[#allocation2 + $0x2a8] sm:$0xff]
    %v115 = vld [vmem:[#allocation2 + $0x2b0] sm:$0xff]
    %v116 = vld [vmem:[#allocation2 + $0x2b8] sm:$0xff]
    %v117 = vld [vmem:[#allocation2 + $0x2c0] sm:$0xff]
    %v118 = vld [vmem:[#allocation2 + $0x2c8] sm:$0xff]
    %v119 = vld [vmem:[#allocation2 + $0x2d0] sm:$0xff]
    %v120 = vld [vmem:[#allocation2 + $0x2d8] sm:$0xff]
    %v121 = vld [vmem:[#allocation2 + $0x2e0] sm:$0xff]
    %v122 = vld [vmem:[#allocation2 + $0x2e8] sm:$0xff]
    %v123 = vld [vmem:[#allocation2 + $0x2f0] sm:$0xff]
    %v124 = vld [vmem:[#allocation2 + $0x2f8] sm:$0xff]
    %v125 = vld [vmem:[#allocation2 + $0x300] sm:$0xff]
    %v126 = vld [vmem:[#allocation2 + $0x308] sm:$0xff]
    %v127 = vld [vmem:[#allocation2 + $0x310] sm:$0xff]
    %v128 = vld [vmem:[#allocation2 + $0x318] sm:$0xff]
    %v129 = vld [vmem:[#allocation2 + $0x320] sm:$0xff]
    %v130 = vld [vmem:[#allocation2 + $0x328] sm:$0xff]
    %v131 = vld [vmem:[#allocation2 + $0x330] sm:$0xff]
    %v132 = vld [vmem:[#allocation2 + $0x338] sm:$0xff]
    %v133 = vld [vmem:[#allocation2 + $0x340] sm:$0xff]
    %v134 = vld [vmem:[#allocation2 + $0x348] sm:$0xff]
    %v135 = vld [vmem:[#allocation2 + $0x350] sm:$0xff]
    %v136 = vld [vmem:[#allocation2 + $0x358] sm:$0xff]
    %v137 = vld [vmem:[#allocation2 + $0x360] sm:$0xff]
    %v138 = vld [vmem:[#allocation2 + $0x368] sm:$0xff]
    %v139 = vld [vmem:[#allocation2 + $0x370] sm:$0xff]
    %v140 = vld [vmem:[#allocation2 + $0x378] sm:$0xff]
    %v141 = vld [vmem:[#allocation2 + $0x380] sm:$0xff]
    %v142 = vld [vmem:[#allocation2 + $0x388] sm:$0xff]
    %v143 = vld [vmem:[#allocation2 + $0x390] sm:$0xff]
    %v144 = vld [vmem:[#allocation2 + $0x398] sm:$0xff]
    %v145 = vld [vmem:[#allocation2 + $0x3a0] sm:$0xff]
    %v146 = vld [vmem:[#allocation2 + $0x3a8] sm:$0xff]
    %v147 = vld [vmem:[#allocation2 + $0x3b0] sm:$0xff]
    %v148 = vld [vmem:[#allocation2 + $0x3b8] sm:$0xff]
    %v149 = vld [vmem:[#allocation2 + $0x3c0] sm:$0xff]
    %v150 = vld [vmem:[#allocation2 + $0x3c8] sm:$0xff]
    %v151 = vld [vmem:[#allocation2 + $0x3d0] sm:$0xff]
    %v152 = vld [vmem:[#allocation2 + $0x3d8] sm:$0xff]
    %v153 = vld [vmem:[#allocation2 + $0x3e0] sm:$0xff]
    %v154 = vld [vmem:[#allocation2 + $0x3e8] sm:$0xff]
    %v155 = vld [vmem:[#allocation2 + $0x3f0] sm:$0xff]
    %v156 = vld [vmem:[#allocation2 + $0x3f8] sm:$0xff]
    %157 = vmatpush.msra.mxu0 %v89
    %158 = vmatpush.msra.mxu0 %v85
    %159 = vmatpush.msra.mxu0 %v81
    %160 = vmatpush.msra.mxu0 %v77
    %161 = vmatpush.msra.mxu0 %v73
    %162 = vmatpush.msra.mxu0 %v69
    %163 = vmatpush.msra.mxu0 %v65
    %164 = vmatpush.msra.mxu0 %v61
    %165 = vmatpush.msra.mxu0 %v57
    %166 = vmatpush.msra.mxu0 %v53
    %167 = vmatpush.msra.mxu0 %v49
    %168 = vmatpush.msra.mxu0 %v45
    %169 = vmatpush.msra.mxu0 %v41
    %170 = vmatpush.msra.mxu0 %v37
    %171 = vmatpush.msra.mxu0 %v33
    %172 = vmatpush.msra.mxu0 %v29
    %173 = vmatmul.f32.gmra.mxu0 %v27
    %v174 = vpop.f32.mrf.mxu0
    %v175 = vadd.f32 0.0, %v174
    %176 = vdwg.mxu0
    %177 = vmatpush.msra.mxu0 %v153
    %178 = vmatpush.msra.mxu0 %v149
    %179 = vmatpush.msra.mxu0 %v145
    %180 = vmatpush.msra.mxu0 %v141
    %181 = vmatpush.msra.mxu0 %v137
    %182 = vmatpush.msra.mxu0 %v133
    %183 = vmatpush.msra.mxu0 %v129
    %184 = vmatpush.msra.mxu0 %v125
    %185 = vmatpush.msra.mxu0 %v121
    %186 = vmatpush.msra.mxu0 %v117
    %187 = vmatpush.msra.mxu0 %v113
    %188 = vmatpush.msra.mxu0 %v109
    %189 = vmatpush.msra.mxu0 %v105
    %190 = vmatpush.msra.mxu0 %v101
    %191 = vmatpush.msra.mxu0 %v97
    %192 = vmatpush.msra.mxu0 %v93
    %193 = vmatmul.f32.gmra.mxu0 %v28
    %v194 = vpop.f32.mrf.mxu0
    %v195 = vadd.f32 %v175, %v194
    %196 = vdwg.mxu0
    %197 = vmatpush.msra.mxu0 %v90
    %198 = vmatpush.msra.mxu0 %v86
    %199 = vmatpush.msra.mxu0 %v82
    %200 = vmatpush.msra.mxu0 %v78
    %201 = vmatpush.msra.mxu0 %v74
    %202 = vmatpush.msra.mxu0 %v70
    %203 = vmatpush.msra.mxu0 %v66
    %204 = vmatpush.msra.mxu0 %v62
    %205 = vmatpush.msra.mxu0 %v58
    %206 = vmatpush.msra.mxu0 %v54
    %207 = vmatpush.msra.mxu0 %v50
    %208 = vmatpush.msra.mxu0 %v46
    %209 = vmatpush.msra.mxu0 %v42
    %210 = vmatpush.msra.mxu0 %v38
    %211 = vmatpush.msra.mxu0 %v34
    %212 = vmatpush.msra.mxu0 %v30
    %213 = vmatmul.f32.gmra.mxu0 %v27
    %v214 = vpop.f32.mrf.mxu0
    %v215 = vadd.f32 0.0, %v214
    %216 = vdwg.mxu0
    %217 = vmatpush.msra.mxu0 %v154
    %218 = vmatpush.msra.mxu0 %v150
    %219 = vmatpush.msra.mxu0 %v146
    %220 = vmatpush.msra.mxu0 %v142
    %221 = vmatpush.msra.mxu0 %v138
    %222 = vmatpush.msra.mxu0 %v134
    %223 = vmatpush.msra.mxu0 %v130
    %224 = vmatpush.msra.mxu0 %v126
    %225 = vmatpush.msra.mxu0 %v122
    %226 = vmatpush.msra.mxu0 %v118
    %227 = vmatpush.msra.mxu0 %v114
    %228 = vmatpush.msra.mxu0 %v110
    %229 = vmatpush.msra.mxu0 %v106
    %230 = vmatpush.msra.mxu0 %v102
    %231 = vmatpush.msra.mxu0 %v98
    %232 = vmatpush.msra.mxu0 %v94
    %233 = vmatmul.f32.gmra.mxu0 %v28
    %v234 = vpop.f32.mrf.mxu0
    %v235 = vadd.f32 %v215, %v234
    %236 = vdwg.mxu0
    %237 = vmatpush.msra.mxu0 %v91
    %238 = vmatpush.msra.mxu0 %v87
    %239 = vmatpush.msra.mxu0 %v83
    %240 = vmatpush.msra.mxu0 %v79
    %241 = vmatpush.msra.mxu0 %v75
    %242 = vmatpush.msra.mxu0 %v71
    %243 = vmatpush.msra.mxu0 %v67
    %244 = vmatpush.msra.mxu0 %v63
    %245 = vmatpush.msra.mxu0 %v59
    %246 = vmatpush.msra.mxu0 %v55
    %247 = vmatpush.msra.mxu0 %v51
    %248 = vmatpush.msra.mxu0 %v47
    %249 = vmatpush.msra.mxu0 %v43
    %250 = vmatpush.msra.mxu0 %v39
    %251 = vmatpush.msra.mxu0 %v35
    %252 = vmatpush.msra.mxu0 %v31
    %253 = vmatmul.f32.gmra.mxu0 %v27
    %v254 = vpop.f32.mrf.mxu0
    %v255 = vadd.f32 0.0, %v254
    %256 = vdwg.mxu0
    %257 = vmatpush.msra.mxu0 %v155
    %258 = vmatpush.msra.mxu0 %v151
    %259 = vmatpush.msra.mxu0 %v147
    %260 = vmatpush.msra.mxu0 %v143
    %261 = vmatpush.msra.mxu0 %v139
    %262 = vmatpush.msra.mxu0 %v135
    %263 = vmatpush.msra.mxu0 %v131
    %264 = vmatpush.msra.mxu0 %v127
    %265 = vmatpush.msra.mxu0 %v123
    %266 = vmatpush.msra.mxu0 %v119
    %267 = vmatpush.msra.mxu0 %v115
    %268 = vmatpush.msra.mxu0 %v111
    %269 = vmatpush.msra.mxu0 %v107
    %270 = vmatpush.msra.mxu0 %v103
    %271 = vmatpush.msra.mxu0 %v99
    %272 = vmatpush.msra.mxu0 %v95
    %273 = vmatmul.f32.gmra.mxu0 %v28
    %v274 = vpop.f32.mrf.mxu0
    %v275 = vadd.f32 %v255, %v274
    %276 = vdwg.mxu0
    %277 = vmatpush.msra.mxu0 %v92
    %278 = vmatpush.msra.mxu0 %v88
    %279 = vmatpush.msra.mxu0 %v84
    %280 = vmatpush.msra.mxu0 %v80
    %281 = vmatpush.msra.mxu0 %v76
    %282 = vmatpush.msra.mxu0 %v72
    %283 = vmatpush.msra.mxu0 %v68
    %284 = vmatpush.msra.mxu0 %v64
    %285 = vmatpush.msra.mxu0 %v60
    %286 = vmatpush.msra.mxu0 %v56
    %287 = vmatpush.msra.mxu0 %v52
    %288 = vmatpush.msra.mxu0 %v48
    %289 = vmatpush.msra.mxu0 %v44
    %290 = vmatpush.msra.mxu0 %v40
    %291 = vmatpush.msra.mxu0 %v36
    %292 = vmatpush.msra.mxu0 %v32
    %293 = vmatmul.f32.gmra.mxu0 %v27
    %v294 = vpop.f32.mrf.mxu0
    %v295 = vadd.f32 0.0, %v294
    %296 = vdwg.mxu0
    %297 = vmatpush.msra.mxu0 %v156
    %298 = vmatpush.msra.mxu0 %v152
    %299 = vmatpush.msra.mxu0 %v148
    %300 = vmatpush.msra.mxu0 %v144
    %301 = vmatpush.msra.mxu0 %v140
    %302 = vmatpush.msra.mxu0 %v136
    %303 = vmatpush.msra.mxu0 %v132
    %304 = vmatpush.msra.mxu0 %v128
    %305 = vmatpush.msra.mxu0 %v124
    %306 = vmatpush.msra.mxu0 %v120
    %307 = vmatpush.msra.mxu0 %v116
    %308 = vmatpush.msra.mxu0 %v112
    %309 = vmatpush.msra.mxu0 %v108
    %310 = vmatpush.msra.mxu0 %v104
    %311 = vmatpush.msra.mxu0 %v100
    %312 = vmatpush.msra.mxu0 %v96
    %313 = vmatmul.f32.gmra.mxu0 %v28
    %v314 = vpop.f32.mrf.mxu0
    %v315 = vadd.f32 %v295, %v314
    %316 = vdwg.mxu0
    %317 = vst [vmem:[%s2] sm:$0xff] %v195
    %318 = vst [vmem:[%s2 + $0x8] sm:$0xff] %v235
    %319 = vst [vmem:[%s2 + $0x10] sm:$0xff] %v275
    %320 = vst [vmem:[%s2 + $0x18] sm:$0xff] %v315
    // Predicated region
    $region14: #{fn.1} parent=1 // pred_check
      _
    $region15: #{fn.1} parent=1 // pred_check_branch
      %322 = sbr.rel (0) target = $region17
    $region16: #{fn.1} parent=1 // pred_region
      _
    $region17: #{fn.1} parent=1 // pred_fallthru
      _
    // Predicated region
    $region18: #{fn.1} parent=1 // pred_check
      _
    $region19: #{fn.1} parent=1 // pred_check_branch
      %324 = sbr.rel (0) target = $region21
    $region20: #{fn.1} parent=1 // pred_region
      _
    $region21: #{fn.1} parent=1 // pred_fallthru
      _
    %325 = vsyncpa [#allocation3], 1

</llo_original>
